<compile_context>
chip_gen: v5e
topology: v5e:2x2
jax: 0.10.0
libtpu: 0.0.40
codegen_flags: <defaults>
</compile_context>

<pallas_src>
import math

import jax
import jax.numpy as jnp
from jax.experimental import pallas as pl
from jax.experimental.pallas import tpu as pltpu


def _round_up(v: int, m: int) -> int:
    return ((v + m - 1) // m) * m


def _make_matmul_kernel(with_bias: bool, rhs_resident: bool, tk: int):
    """acc(+)= A_tile @ B_tile, accumulator initialized with bias at k==0."""

    def kernel(*refs):
        if with_bias:
            a_ref, b_ref, bias_ref, o_ref, acc_ref = refs
        else:
            a_ref, b_ref, o_ref, acc_ref = refs

        k = pl.program_id(1)

        @pl.when(k == 0)
        def _():
            if with_bias:
                # Fold bias into the accumulator init (adj @ S + bias).
                acc_ref[...] = jnp.zeros_like(acc_ref) + bias_ref[...]
            else:
                acc_ref[...] = jnp.zeros_like(acc_ref)

        if rhs_resident:
            # RHS is fully resident in VMEM (constant index_map); slice the
            # current contraction chunk out of it.
            off = pl.multiple_of(k * tk, 128)
            rhs = b_ref[pl.ds(off, tk), :]
        else:
            rhs = b_ref[...]

        acc_ref[...] += jnp.dot(a_ref[...], rhs,
                                preferred_element_type=jnp.float32)

        @pl.when(k == pl.num_programs(1) - 1)
        def _():
            o_ref[...] = acc_ref[...].astype(o_ref.dtype)

    return kernel


def _tiled_matmul(a, b, bias2d=None, *, tm, tk, out_dtype, rhs_resident):
    """out = a @ b (+ bias2d), tiled (rows x contraction) on the MXU.

    a: [M, K], b: [K, N], bias2d: [1, N] or None.  M % tm == 0, K % tk == 0.
    """
    M, K = a.shape
    K2, N = b.shape
    assert K == K2 and M % tm == 0 and K % tk == 0
    grid = (M // tm, K // tk)
    with_bias = bias2d is not None

    in_specs = [pl.BlockSpec((tm, tk), lambda i, k: (i, k))]       # A tiles
    if rhs_resident:
        in_specs.append(pl.BlockSpec((K, N), lambda i, k: (0, 0)))  # B resident
    else:
        in_specs.append(pl.BlockSpec((tk, N), lambda i, k: (k, 0)))  # B tiles
    operands = [a, b]
    if with_bias:
        in_specs.append(pl.BlockSpec((1, N), lambda i, k: (0, 0)))
        operands.append(bias2d)

    out_itemsize = jnp.dtype(out_dtype).itemsize
    a_item = a.dtype.itemsize
    b_item = b.dtype.itemsize

    # VMEM budget: 2x buffering for every pipelined / constant-index-map
    # input plus the f32 accumulator scratch; clamp to <= 48 MiB (v7x safe).
    vmem_est = (
        2 * tm * tk * a_item
        + (2 * K * N * b_item if rhs_resident else 2 * tk * N * b_item)
        + (2 * N * 4 if with_bias else 0)
        + 2 * tm * N * out_itemsize
        + tm * N * 4
    )
    vmem_limit = int(min(48 * 2 ** 20, max(16 * 2 ** 20, 2 * vmem_est)))

    flops = 2 * M * K * N
    bytes_accessed = (
        M * K * a_item
        + (K * N * b_item if rhs_resident else K * N * b_item * (M // tm))
        + (N * 4 if with_bias else 0)
        + M * N * out_itemsize
    )

    return pl.pallas_call(
        _make_matmul_kernel(with_bias, rhs_resident, tk),
        out_shape=jax.ShapeDtypeStruct((M, N), out_dtype),
        grid_spec=pltpu.PrefetchScalarGridSpec(
            num_scalar_prefetch=0,
            grid=grid,
            in_specs=in_specs,
            out_specs=pl.BlockSpec((tm, N), lambda i, k: (i, 0)),
            scratch_shapes=[pltpu.VMEM((tm, N), jnp.float32)],
        ),
        compiler_params=pltpu.CompilerParams(
            dimension_semantics=("parallel", "arbitrary"),
            vmem_limit_bytes=vmem_limit,
        ),
        cost_estimate=pl.CostEstimate(
            flops=int(flops), transcendentals=0,
            bytes_accessed=int(bytes_accessed),
        ),
    )(*operands)


def graph_convolution(adj, x, weight, bias=None, *, tm=512, tk=1024):
    """GCN forward: adj @ (x @ weight) + bias.

    adj: [N, N] (dense), x: [N, in_f], weight: [in_f, out_f],
    bias: [out_f] or None.  Returns float32 [N, out_f].
    """
    n, in_f = x.shape
    out_f = weight.shape[1]
    with_bias = bias is not None

    in_pad = _round_up(in_f, 128)
    out_pad = _round_up(out_f, 128)       # lane-dense output (>=128 lanes)
    n_pad128 = _round_up(n, 128)

    # Output-row tile: clamp to N; keep >= 2 row tiles when N allows so the
    # "parallel" row axis can split across TensorCores (v7x megacore).
    tm_eff = min(tm, n_pad128)
    if 256 <= n_pad128 <= tm:
        tm_eff = _round_up((n_pad128 + 1) // 2, 128)
    n_rows_pad = _round_up(n_pad128, tm_eff)

    # Node-contraction tile.
    tk_eff = min(tk, n_pad128)
    n_cols_pad = _round_up(n_pad128, tk_eff)

    # ---- operand prep (pads / casts are no-ops when already aligned) ------
    # The O(N^2) adjacency is the only big operand: stream it as bf16 (half
    # the HBM bytes).  For a hot path, pass adj pre-cast/pre-padded so the
    # wrapper-side convert+pad disappears entirely.
    adj_c = adj if adj.dtype == jnp.bfloat16 else adj.astype(jnp.bfloat16)
    if adj_c.shape != (n_rows_pad, n_cols_pad):
        adj_c = jnp.pad(adj_c, ((0, n_rows_pad - n), (0, n_cols_pad - n)))

    x_p = x if x.shape == (n_cols_pad, in_pad) else jnp.pad(
        x, ((0, n_cols_pad - n), (0, in_pad - in_f)))
    w_p = weight if weight.shape == (in_pad, out_pad) else jnp.pad(
        weight, ((0, in_pad - in_f), (0, out_pad - out_f)))

    # ---- stage 1: support = X @ W, computed ONCE ---------------------------
    # f32 inputs, f32 accumulation, bf16 result (single rounding step; feeds
    # the stage-2 MXU at full rate).  Weight stays resident in VMEM.
    tr = 512 if (tk_eff > 512 and tk_eff % 512 == 0) else tk_eff
    tki = in_pad if in_pad <= 1024 else math.gcd(in_pad, 1024)
    support = _tiled_matmul(
        x_p, w_p, None, tm=tr, tk=tki,
        out_dtype=jnp.bfloat16, rhs_resident=True)

    # ---- stage 2: out = adj @ support (+ bias) -----------------------------
    # Keep the whole bf16 support resident in VMEM when it fits (budgeting 2x
    # for buffering); otherwise stream (tk, out_pad) tiles per k step.  Bias
    # is folded into the accumulator init inside the kernel.
    support_resident = (2 * n_cols_pad * out_pad * 2) <= 16 * 2 ** 20
    bias2d = None
    if with_bias:
        b2 = bias.astype(jnp.float32).reshape(1, out_f)
        bias2d = b2 if out_f == out_pad else jnp.pad(
            b2, ((0, 0), (0, out_pad - out_f)))

    out_padded = _tiled_matmul(
        adj_c, support, bias2d, tm=tm_eff, tk=tk_eff,
        out_dtype=jnp.float32, rhs_resident=support_resident)

    # Slice the lane-padded result back to the logical shape.
    return out_padded[:n, :out_f]


if __name__ == "__main__":
    # Module config (small, consistent with the forward pass shapes).
    num_nodes = 16
    in_features = 32
    out_features = 64

    key = jax.random.PRNGKey(0)
    k_x, k_adj, k_w, k_b = jax.random.split(key, 4)

    # Deterministic parameter init mirroring reset_parameters():
    # uniform(-stdv, stdv) with stdv = 1/sqrt(out_features).
    stdv = 1.0 / math.sqrt(out_features)
    weight = jax.random.uniform(
        k_w, (in_features, out_features), jnp.float32, -stdv, stdv)
    bias = jax.random.uniform(k_b, (out_features,), jnp.float32, -stdv, stdv)

    # Inputs: node features and a (dense) row-normalized adjacency.
    x = jax.random.normal(k_x, (num_nodes, in_features), jnp.float32)
    adj_raw = jax.random.uniform(k_adj, (num_nodes, num_nodes), jnp.float32)
    adj = (adj_raw > 0.7).astype(jnp.float32) + jnp.eye(num_nodes, dtype=jnp.float32)
    adj = adj / jnp.sum(adj, axis=1, keepdims=True)

    # --- with bias ---------------------------------------------------------
    out = graph_convolution(adj, x, weight, bias)
    out = jax.block_until_ready(out)
    ref = adj @ (x @ weight) + bias[None, :]
    assert out.shape == (num_nodes, out_features)
    # bf16 adj / bf16 support with f32 accumulation -> loose-ish tolerance.
    assert jnp.allclose(out, ref, atol=1e-2, rtol=1e-2), (
        float(jnp.max(jnp.abs(out - ref))))

    # --- no-bias path (separate kernel variant, no zeros DMA) ---------------
    out_nb = graph_convolution(adj, x, weight, None)
    out_nb = jax.block_until_ready(out_nb)
    ref_nb = adj @ (x @ weight)
    assert out_nb.shape == (num_nodes, out_features)
    assert jnp.allclose(out_nb, ref_nb, atol=1e-2, rtol=1e-2), (
        float(jnp.max(jnp.abs(out_nb - ref_nb))))

    print("KERNEL_OK")
</pallas_src>

<mosaic_0001>
module attributes {stable_mosaic.version = 11 : i64} {
  func.func @kernel(%arg0: i32, %arg1: i32, %arg2: memref<128x128xf32, #tpu.memory_space<vmem>>, %arg3: memref<128x128xf32, #tpu.memory_space<vmem>>, %arg4: memref<128x128xbf16, #tpu.memory_space<vmem>>, %arg5: memref<128x128xf32, #tpu.memory_space<vmem>>) attributes {dimension_semantics = [#tpu.dimension_semantics<parallel>, #tpu.dimension_semantics<arbitrary>], iteration_bounds = array<i64: 1, 1>, scalar_prefetch = 0 : i64, scratch_operands = 1 : i64, tpu.core_type = #tpu.core_type<tc>, window_params = [{transform_indices = @transform_0, window_bounds = array<i64: 128, 128>}, {pipeline_mode = #tpu.pipeline_mode<synchronous>, transform_indices = @transform_1, window_bounds = array<i64: 128, 128>}, {transform_indices = @transform_2, window_bounds = array<i64: 128, 128>}]} {
    %c0_i32 = arith.constant 0 : i32
    %0 = arith.cmpi eq, %arg1, %c0_i32 : i32
    %1 = arith.extui %0 : i1 to i32
    %c0_i32_0 = arith.constant 0 : i32
    %2 = arith.cmpi ne, %1, %c0_i32_0 : i32
    scf.if %2 {
      %cst_9 = arith.constant 0.000000e+00 : f32
      %15 = vector.broadcast %cst_9 : f32 to vector<128x128xf32>
      %c0_10 = arith.constant 0 : index
      %c0_11 = arith.constant 0 : index
      %16 = vector.load %arg5[%c0_10, %c0_11] : memref<128x128xf32, #tpu.memory_space<vmem>>, vector<128x128xf32>
      tpu.vector_store %arg5[%c0_10, %c0_11], %15 {strides = array<i32>} : memref<128x128xf32, #tpu.memory_space<vmem>>, vector<128x128xf32>,
    } else {
    }
    %c128_i32 = arith.constant 128 : i32
    %3 = arith.muli %arg1, %c128_i32 : i32
    %4 = tpu.assume_multiple %3, 128 : i32
    %5 = arith.index_cast %4 : i32 to index
    %c0 = arith.constant 0 : index
    %6 = vector.load %arg3[%5, %c0] : memref<128x128xf32, #tpu.memory_space<vmem>>, vector<128x128xf32>
    %c0_1 = arith.constant 0 : index
    %c0_2 = arith.constant 0 : index
    %7 = vector.load %arg5[%c0_1, %c0_2] : memref<128x128xf32, #tpu.memory_space<vmem>>, vector<128x128xf32>
    %c0_3 = arith.constant 0 : index
    %c0_4 = arith.constant 0 : index
    %8 = vector.load %arg2[%c0_3, %c0_4] : memref<128x128xf32, #tpu.memory_space<vmem>>, vector<128x128xf32>
    %cst = arith.constant dense<0.000000e+00> : vector<128x128xf32>
    %9 = tpu.matmul %8, %6, %cst {dimension_numbers = #tpu.dot_dimension_numbers<[1], [0], [0], [1], [0, 0, 1, 1], [], []>} : vector<128x128xf32>, vector<128x128xf32>, vector<128x128xf32> -> vector<128x128xf32>
    %10 = arith.addf %7, %9 : vector<128x128xf32>
    %c0_5 = arith.constant 0 : index
    %c0_6 = arith.constant 0 : index
    %11 = vector.load %arg5[%c0_5, %c0_6] : memref<128x128xf32, #tpu.memory_space<vmem>>, vector<128x128xf32>
    tpu.vector_store %arg5[%c0_5, %c0_6], %10 {strides = array<i32>} : memref<128x128xf32, #tpu.memory_space<vmem>>, vector<128x128xf32>,
    %c0_i32_7 = arith.constant 0 : i32
    %12 = arith.cmpi eq, %arg1, %c0_i32_7 : i32
    %13 = arith.extui %12 : i1 to i32
    %c0_i32_8 = arith.constant 0 : i32
    %14 = arith.cmpi ne, %13, %c0_i32_8 : i32
    scf.if %14 {
      %c0_9 = arith.constant 0 : index
      %c0_10 = arith.constant 0 : index
      %15 = vector.load %arg5[%c0_9, %c0_10] : memref<128x128xf32, #tpu.memory_space<vmem>>, vector<128x128xf32>
      %16 = arith.truncf %15 : vector<128x128xf32> to vector<128x128xbf16>
      %c0_11 = arith.constant 0 : index
      %c0_12 = arith.constant 0 : index
      %17 = vector.load %arg4[%c0_11, %c0_12] : memref<128x128xbf16, #tpu.memory_space<vmem>>, vector<128x128xbf16>
      tpu.vector_store %arg4[%c0_11, %c0_12], %16 {strides = array<i32>} : memref<128x128xbf16, #tpu.memory_space<vmem>>, vector<128x128xbf16>,
    } else {
    }
    return
  }
  func.func @transform_0(%arg0: i32, %arg1: i32) -> (i32, i32) {
    %c0_i32 = arith.constant 0 : i32
    return %arg0, %arg1 : i32, i32
  }
  func.func @transform_1(%arg0: i32, %arg1: i32) -> (i32, i32) {
    %c0_i32 = arith.constant 0 : i32
    %c0_i32_0 = arith.constant 0 : i32
    %c0_i32_1 = arith.constant 0 : i32
    return %c0_i32, %c0_i32_0 : i32, i32
  }
  func.func @transform_2(%arg0: i32, %arg1: i32) -> (i32, i32) {
    %c0_i32 = arith.constant 0 : i32
    %c0_i32_0 = arith.constant 0 : i32
    return %arg0, %c0_i32 : i32, i32
  }
}

</mosaic_0001>

<llo_original>
// kernel: tpu_custom_call.1
$region0: #{tpu_custom_call.1}
  #allocation0 [shape = 'u32[]', space=smem, size = 0x4, offset = 0x4, fixed_abs, tag = 'smem constant byte address 0x4 - core index']
  #allocation1 [shape = 'u32[72,128]{1,0:T(1,128)}', space=vmem, size = 0x9000, scoped, tag = 'internal scratch']
  #allocation2 [shape = 'f32[128,128]{1,0:T(8,128)}', space=vmem, size = 0x10000, scoped, tag = 'scratch operand']
  %s0 = inlined_call_operand.hbm [shape: f32[128,128], index: 0, kind: input, shape index: {}]
  %s1 = inlined_call_operand.hbm [shape: f32[128,128], index: 1, kind: input, shape index: {}]
  %s2 = inlined_call_operand.hbm [shape: bf16[128,128], index: 2, kind: output, shape index: {}]
  %s3 = sld [smem:[#allocation0]]
  $region34: #{tpu_custom_call.1} parent=0
    _
  %s5 = ssub.s32 1, %s3
  %s6 = scalar_select 0, %s5, %s3
  $region1: #{tpu_custom_call.1} parent=0
    #allocation3 [shape = 'u8[65536]{0}', space=vmem, size = 0x10000, scoped, tag = 'input window, operand 0, single buffered']
    #allocation4 [shape = 's32[1]{0}', space=sflag, size = 0x4, scoped, tag = 'scoped memory for tpu_custom_call.1']
    #allocation5 [shape = 's32[1]{0}', space=sflag, size = 0x4, scoped, tag = 'scoped memory for tpu_custom_call.1']
    #allocation6 [shape = 'u8[65536]{0}', space=vmem, size = 0x10000, scoped, tag = 'input window, operand 1, single buffered']
    #allocation7 [shape = 's32[1]{0}', space=sflag, size = 0x4, scoped, tag = 'scoped memory for tpu_custom_call.1']
    #allocation8 [shape = 'u8[32768]{0}', space=vmem, size = 0x8000, scoped, tag = 'output window, operand 0, single buffered']
    %7 = vsyncpa [#allocation4], 0
    %8 = vsyncpa [#allocation7], 0
    %9 = vsyncpa [#allocation5], 0
    // Predicated region
    $region2: #{tpu_custom_call.1} parent=1 // pred_check
      _
    $region3: #{tpu_custom_call.1} parent=1 // pred_check_branch
      %11 = sbr.rel (0) target = $region5
    $region4: #{tpu_custom_call.1} parent=1 // pred_region
      %13 = vsyncadd [#allocation4], 0
      %s14 = sshll.u32 %s0, 4
      %s15 = int_to_ptr.hbm [resolvable:$true] %s14
      %s16 = sshll.u32 [#allocation3], 4
      %s17 = int_to_ptr.vmem [resolvable:$true] %s16
      %22 = dma.hbm_to_vmem [thread:$0]  %s15, 2048, %s17, [#allocation4], 128, 128, 8
    $region5: #{tpu_custom_call.1} parent=1 // pred_fallthru
      _
    // Predicated region
    $region6: #{tpu_custom_call.1} parent=1 // pred_check
      _
    $region7: #{tpu_custom_call.1} parent=1 // pred_check_branch
      %24 = sbr.rel (0) target = $region9
    $region8: #{tpu_custom_call.1} parent=1 // pred_region
      %26 = vsyncadd [#allocation7], 0
      %s27 = sshll.u32 %s1, 4
      %s28 = int_to_ptr.hbm [resolvable:$true] %s27
      %s29 = sshll.u32 [#allocation6], 4
      %s30 = int_to_ptr.vmem [resolvable:$true] %s29
      %35 = dma.hbm_to_vmem [thread:$0]  %s28, 2048, %s30, [#allocation7], 128, 128, 8
    $region9: #{tpu_custom_call.1} parent=1 // pred_fallthru
      _
    // Predicated region
    $region10: #{tpu_custom_call.1} parent=1 // pred_check
      _
    $region11: #{tpu_custom_call.1} parent=1 // pred_check_branch
      %37 = sbr.rel (0) target = $region13
    $region12: #{tpu_custom_call.1} parent=1 // pred_region
      %39 = dma.done [#allocation4], 2048
    $region13: #{tpu_custom_call.1} parent=1 // pred_fallthru
      _
    // Predicated region
    $region14: #{tpu_custom_call.1} parent=1 // pred_check
      _
    $region15: #{tpu_custom_call.1} parent=1 // pred_check_branch
      %41 = sbr.rel (0) target = $region17
    $region16: #{tpu_custom_call.1} parent=1 // pred_region
      %43 = dma.done [#allocation7], 2048
    $region17: #{tpu_custom_call.1} parent=1 // pred_fallthru
      _
    %p44 = scmp.eq.s32.totalorder 0, 0
    // Predicated region
    $region18: #{tpu_custom_call.1} parent=1 // pred_check
      %p45 = pneg %p44
    $region19: #{tpu_custom_call.1} parent=1 // pred_check_branch
      %47 = sbr.rel (%p45) target = $region21
    $region20: #{tpu_custom_call.1} parent=1 // pred_region
      %48 = vst [vmem:[#allocation2] sm:$0xff] 0.0
      %49 = vst [vmem:[#allocation2 + $0x8] sm:$0xff] 0.0
      %50 = vst [vmem:[#allocation2 + $0x10] sm:$0xff] 0.0
      %51 = vst [vmem:[#allocation2 + $0x18] sm:$0xff] 0.0
      %52 = vst [vmem:[#allocation2 + $0x20] sm:$0xff] 0.0
      %53 = vst [vmem:[#allocation2 + $0x28] sm:$0xff] 0.0
      %54 = vst [vmem:[#allocation2 + $0x30] sm:$0xff] 0.0
      %55 = vst [vmem:[#allocation2 + $0x38] sm:$0xff] 0.0
      %56 = vst [vmem:[#allocation2 + $0x40] sm:$0xff] 0.0
      %57 = vst [vmem:[#allocation2 + $0x48] sm:$0xff] 0.0
      %58 = vst [vmem:[#allocation2 + $0x50] sm:$0xff] 0.0
      %59 = vst [vmem:[#allocation2 + $0x58] sm:$0xff] 0.0
      %60 = vst [vmem:[#allocation2 + $0x60] sm:$0xff] 0.0
      %61 = vst [vmem:[#allocation2 + $0x68] sm:$0xff] 0.0
      %62 = vst [vmem:[#allocation2 + $0x70] sm:$0xff] 0.0
      %63 = vst [vmem:[#allocation2 + $0x78] sm:$0xff] 0.0
    $region21: #{tpu_custom_call.1} parent=1 // pred_fallthru
      _
    %s64 = smul.u32 0, 128
    %s65 = scalar_lea.vmem [#allocation6], %s64
    %v66 = vld [vmem:[%s65] sm:$0xff]
    %v67 = vld [vmem:[%s65 + $0x8] sm:$0xff]
    %v68 = vld [vmem:[%s65 + $0x10] sm:$0xff]
    %v69 = vld [vmem:[%s65 + $0x18] sm:$0xff]
    %v70 = vld [vmem:[%s65 + $0x20] sm:$0xff]
    %v71 = vld [vmem:[%s65 + $0x28] sm:$0xff]
    %v72 = vld [vmem:[%s65 + $0x30] sm:$0xff]
    %v73 = vld [vmem:[%s65 + $0x38] sm:$0xff]
    %v74 = vld [vmem:[%s65 + $0x40] sm:$0xff]
    %v75 = vld [vmem:[%s65 + $0x48] sm:$0xff]
    %v76 = vld [vmem:[%s65 + $0x50] sm:$0xff]
    %v77 = vld [vmem:[%s65 + $0x58] sm:$0xff]
    %v78 = vld [vmem:[%s65 + $0x60] sm:$0xff]
    %v79 = vld [vmem:[%s65 + $0x68] sm:$0xff]
    %v80 = vld [vmem:[%s65 + $0x70] sm:$0xff]
    %v81 = vld [vmem:[%s65 + $0x78] sm:$0xff]
    %v82 = vld [vmem:[#allocation2] sm:$0xff]
    %v83 = vld [vmem:[#allocation2 + $0x8] sm:$0xff]
    %v84 = vld [vmem:[#allocation2 + $0x10] sm:$0xff]
    %v85 = vld [vmem:[#allocation2 + $0x18] sm:$0xff]
    %v86 = vld [vmem:[#allocation2 + $0x20] sm:$0xff]
    %v87 = vld [vmem:[#allocation2 + $0x28] sm:$0xff]
    %v88 = vld [vmem:[#allocation2 + $0x30] sm:$0xff]
    %v89 = vld [vmem:[#allocation2 + $0x38] sm:$0xff]
    %v90 = vld [vmem:[#allocation2 + $0x40] sm:$0xff]
    %v91 = vld [vmem:[#allocation2 + $0x48] sm:$0xff]
    %v92 = vld [vmem:[#allocation2 + $0x50] sm:$0xff]
    %v93 = vld [vmem:[#allocation2 + $0x58] sm:$0xff]
    %v94 = vld [vmem:[#allocation2 + $0x60] sm:$0xff]
    %v95 = vld [vmem:[#allocation2 + $0x68] sm:$0xff]
    %v96 = vld [vmem:[#allocation2 + $0x70] sm:$0xff]
    %v97 = vld [vmem:[#allocation2 + $0x78] sm:$0xff]
    %v98 = vld [vmem:[#allocation3] sm:$0xff]
    %v99 = vld [vmem:[#allocation3 + $0x8] sm:$0xff]
    %v100 = vld [vmem:[#allocation3 + $0x10] sm:$0xff]
    %v101 = vld [vmem:[#allocation3 + $0x18] sm:$0xff]
    %v102 = vld [vmem:[#allocation3 + $0x20] sm:$0xff]
    %v103 = vld [vmem:[#allocation3 + $0x28] sm:$0xff]
    %v104 = vld [vmem:[#allocation3 + $0x30] sm:$0xff]
    %v105 = vld [vmem:[#allocation3 + $0x38] sm:$0xff]
    %v106 = vld [vmem:[#allocation3 + $0x40] sm:$0xff]
    %v107 = vld [vmem:[#allocation3 + $0x48] sm:$0xff]
    %v108 = vld [vmem:[#allocation3 + $0x50] sm:$0xff]
    %v109 = vld [vmem:[#allocation3 + $0x58] sm:$0xff]
    %v110 = vld [vmem:[#allocation3 + $0x60] sm:$0xff]
    %v111 = vld [vmem:[#allocation3 + $0x68] sm:$0xff]
    %v112 = vld [vmem:[#allocation3 + $0x70] sm:$0xff]
    %v113 = vld [vmem:[#allocation3 + $0x78] sm:$0xff]
    %114 = vmatpush.msra.mxu0 %v81
    %115 = vmatpush.msra.mxu0 %v80
    %116 = vmatpush.msra.mxu0 %v79
    %117 = vmatpush.msra.mxu0 %v78
    %118 = vmatpush.msra.mxu0 %v77
    %119 = vmatpush.msra.mxu0 %v76
    %120 = vmatpush.msra.mxu0 %v75
    %121 = vmatpush.msra.mxu0 %v74
    %122 = vmatpush.msra.mxu0 %v73
    %123 = vmatpush.msra.mxu0 %v72
    %124 = vmatpush.msra.mxu0 %v71
    %125 = vmatpush.msra.mxu0 %v70
    %126 = vmatpush.msra.mxu0 %v69
    %127 = vmatpush.msra.mxu0 %v68
    %128 = vmatpush.msra.mxu0 %v67
    %129 = vmatpush.msra.mxu0 %v66
    %130 = vmatmul.f32.gmra.mxu0 %v98
    %v131 = vpop.f32.mrf.mxu0
    %v132 = vadd.f32 0.0, %v131
    %133 = vmatmul.f32.gmra.mxu0 %v99
    %v134 = vpop.f32.mrf.mxu0
    %v135 = vadd.f32 0.0, %v134
    %136 = vmatmul.f32.gmra.mxu0 %v100
    %v137 = vpop.f32.mrf.mxu0
    %v138 = vadd.f32 0.0, %v137
    %139 = vmatmul.f32.gmra.mxu0 %v101
    %v140 = vpop.f32.mrf.mxu0
    %v141 = vadd.f32 0.0, %v140
    %142 = vmatmul.f32.gmra.mxu0 %v102
    %v143 = vpop.f32.mrf.mxu0
    %v144 = vadd.f32 0.0, %v143
    %145 = vmatmul.f32.gmra.mxu0 %v103
    %v146 = vpop.f32.mrf.mxu0
    %v147 = vadd.f32 0.0, %v146
    %148 = vmatmul.f32.gmra.mxu0 %v104
    %v149 = vpop.f32.mrf.mxu0
    %v150 = vadd.f32 0.0, %v149
    %151 = vmatmul.f32.gmra.mxu0 %v105
    %v152 = vpop.f32.mrf.mxu0
    %v153 = vadd.f32 0.0, %v152
    %154 = vmatmul.f32.gmra.mxu0 %v106
    %v155 = vpop.f32.mrf.mxu0
    %v156 = vadd.f32 0.0, %v155
    %157 = vmatmul.f32.gmra.mxu0 %v107
    %v158 = vpop.f32.mrf.mxu0
    %v159 = vadd.f32 0.0, %v158
    %160 = vmatmul.f32.gmra.mxu0 %v108
    %v161 = vpop.f32.mrf.mxu0
    %v162 = vadd.f32 0.0, %v161
    %163 = vmatmul.f32.gmra.mxu0 %v109
    %v164 = vpop.f32.mrf.mxu0
    %v165 = vadd.f32 0.0, %v164
    %166 = vmatmul.f32.gmra.mxu0 %v110
    %v167 = vpop.f32.mrf.mxu0
    %v168 = vadd.f32 0.0, %v167
    %169 = vmatmul.f32.gmra.mxu0 %v111
    %v170 = vpop.f32.mrf.mxu0
    %v171 = vadd.f32 0.0, %v170
    %172 = vmatmul.f32.gmra.mxu0 %v112
    %v173 = vpop.f32.mrf.mxu0
    %v174 = vadd.f32 0.0, %v173
    %175 = vmatmul.f32.gmra.mxu0 %v113
    %v176 = vpop.f32.mrf.mxu0
    %v177 = vadd.f32 0.0, %v176
    %178 = vdwg.mxu0
    %v179 = vadd.f32 %v82, %v132
    %v180 = vadd.f32 %v83, %v135
    %v181 = vadd.f32 %v84, %v138
    %v182 = vadd.f32 %v85, %v141
    %v183 = vadd.f32 %v86, %v144
    %v184 = vadd.f32 %v87, %v147
    %v185 = vadd.f32 %v88, %v150
    %v186 = vadd.f32 %v89, %v153
    %v187 = vadd.f32 %v90, %v156
    %v188 = vadd.f32 %v91, %v159
    %v189 = vadd.f32 %v92, %v162
    %v190 = vadd.f32 %v93, %v165
    %v191 = vadd.f32 %v94, %v168
    %v192 = vadd.f32 %v95, %v171
    %v193 = vadd.f32 %v96, %v174
    %v194 = vadd.f32 %v97, %v177
    %195 = vst [vmem:[#allocation2] sm:$0xff] %v179
    %196 = vst [vmem:[#allocation2 + $0x8] sm:$0xff] %v180
    %197 = vst [vmem:[#allocation2 + $0x10] sm:$0xff] %v181
    %198 = vst [vmem:[#allocation2 + $0x18] sm:$0xff] %v182
    %199 = vst [vmem:[#allocation2 + $0x20] sm:$0xff] %v183
    %200 = vst [vmem:[#allocation2 + $0x28] sm:$0xff] %v184
    %201 = vst [vmem:[#allocation2 + $0x30] sm:$0xff] %v185
    %202 = vst [vmem:[#allocation2 + $0x38] sm:$0xff] %v186
    %203 = vst [vmem:[#allocation2 + $0x40] sm:$0xff] %v187
    %204 = vst [vmem:[#allocation2 + $0x48] sm:$0xff] %v188
    %205 = vst [vmem:[#allocation2 + $0x50] sm:$0xff] %v189
    %206 = vst [vmem:[#allocation2 + $0x58] sm:$0xff] %v190
    %207 = vst [vmem:[#allocation2 + $0x60] sm:$0xff] %v191
    %208 = vst [vmem:[#allocation2 + $0x68] sm:$0xff] %v192
    %209 = vst [vmem:[#allocation2 + $0x70] sm:$0xff] %v193
    %210 = vst [vmem:[#allocation2 + $0x78] sm:$0xff] %v194
    // Predicated region
    $region22: #{tpu_custom_call.1} parent=1 // pred_check
      %p211 = pneg %p44
    $region23: #{tpu_custom_call.1} parent=1 // pred_check_branch
      %213 = sbr.rel (%p211) target = $region25
    $region24: #{tpu_custom_call.1} parent=1 // pred_region
      %v214 = vld [vmem:[#allocation2] sm:$0xff]
      %v215 = vld [vmem:[#allocation2 + $0x8] sm:$0xff]
      %v216 = vld [vmem:[#allocation2 + $0x10] sm:$0xff]
      %v217 = vld [vmem:[#allocation2 + $0x18] sm:$0xff]
      %v218 = vld [vmem:[#allocation2 + $0x20] sm:$0xff]
      %v219 = vld [vmem:[#allocation2 + $0x28] sm:$0xff]
      %v220 = vld [vmem:[#allocation2 + $0x30] sm:$0xff]
      %v221 = vld [vmem:[#allocation2 + $0x38] sm:$0xff]
      %v222 = vld [vmem:[#allocation2 + $0x40] sm:$0xff]
      %v223 = vld [vmem:[#allocation2 + $0x48] sm:$0xff]
      %v224 = vld [vmem:[#allocation2 + $0x50] sm:$0xff]
      %v225 = vld [vmem:[#allocation2 + $0x58] sm:$0xff]
      %v226 = vld [vmem:[#allocation2 + $0x60] sm:$0xff]
      %v227 = vld [vmem:[#allocation2 + $0x68] sm:$0xff]
      %v228 = vld [vmem:[#allocation2 + $0x70] sm:$0xff]
      %v229 = vld [vmem:[#allocation2 + $0x78] sm:$0xff]
      %v230 = vpack.c.bf16 %v214, %v214
      %v231 = vpack.c.bf16 %v215, %v215
      %v232 = vpack.c.bf16 %v216, %v216
      %v233 = vpack.c.bf16 %v217, %v217
      %v234 = vpack.c.bf16 %v218, %v218
      %v235 = vpack.c.bf16 %v219, %v219
      %v236 = vpack.c.bf16 %v220, %v220
      %v237 = vpack.c.bf16 %v221, %v221
      %v238 = vpack.c.bf16 %v222, %v222
      %v239 = vpack.c.bf16 %v223, %v223
      %v240 = vpack.c.bf16 %v224, %v224
      %v241 = vpack.c.bf16 %v225, %v225
      %v242 = vpack.c.bf16 %v226, %v226
      %v243 = vpack.c.bf16 %v227, %v227
      %v244 = vpack.c.bf16 %v228, %v228
      %v245 = vpack.c.bf16 %v229, %v229
      %246 = vst [vmem:[#allocation8] sm:$0xf] %v230
      %247 = vst [vmem:[#allocation8 + $0x4] sm:$0xf] %v231
      %248 = vst [vmem:[#allocation8 + $0x8] sm:$0xf] %v232
      %249 = vst [vmem:[#allocation8 + $0xc] sm:$0xf] %v233
      %250 = vst [vmem:[#allocation8 + $0x10] sm:$0xf] %v234
      %251 = vst [vmem:[#allocation8 + $0x14] sm:$0xf] %v235
      %252 = vst [vmem:[#allocation8 + $0x18] sm:$0xf] %v236
      %253 = vst [vmem:[#allocation8 + $0x1c] sm:$0xf] %v237
      %254 = vst [vmem:[#allocation8 + $0x20] sm:$0xf] %v238
      %255 = vst [vmem:[#allocation8 + $0x24] sm:$0xf] %v239
      %256 = vst [vmem:[#allocation8 + $0x28] sm:$0xf] %v240
      %257 = vst [vmem:[#allocation8 + $0x2c] sm:$0xf] %v241
      %258 = vst [vmem:[#allocation8 + $0x30] sm:$0xf] %v242
      %259 = vst [vmem:[#allocation8 + $0x34] sm:$0xf] %v243
      %260 = vst [vmem:[#allocation8 + $0x38] sm:$0xf] %v244
      %261 = vst [vmem:[#allocation8 + $0x3c] sm:$0xf] %v245
    $region25: #{tpu_custom_call.1} parent=1 // pred_fallthru
      _
    // Predicated region
    $region26: #{tpu_custom_call.1} parent=1 // pred_check
      _
    $region27: #{tpu_custom_call.1} parent=1 // pred_check_branch
      %263 = sbr.rel (0) target = $region29
    $region28: #{tpu_custom_call.1} parent=1 // pred_region
      %265 = vsyncadd [#allocation5], 0
      %s266 = sshll.u32 [#allocation8], 4
      %s267 = int_to_ptr.vmem [resolvable:$true] %s266
      %s268 = sshll.u32 %s2, 4
      %s269 = int_to_ptr.hbm [resolvable:$true] %s268
      %274 = dma.vmem_to_hbm [thread:$0]  %s267, 1024, %s269, [#allocation5], 64, 64, 4
    $region29: #{tpu_custom_call.1} parent=1 // pred_fallthru
      _
    // Predicated region
    $region30: #{tpu_custom_call.1} parent=1 // pred_check
      _
    $region31: #{tpu_custom_call.1} parent=1 // pred_check_branch
      %276 = sbr.rel (0) target = $region33
    $region32: #{tpu_custom_call.1} parent=1 // pred_region
      %278 = dma.done [#allocation5], 1024
    $region33: #{tpu_custom_call.1} parent=1 // pred_fallthru
      _
    %279 = vsyncpa [#allocation4], 1
    %280 = vsyncpa [#allocation7], 1
    %281 = vsyncpa [#allocation5], 1

</llo_original>
